<compile_context>
chip_gen: v5e
topology: v5e:2x2
jax: 0.10.0
libtpu: 0.0.40
codegen_flags: <defaults>
</compile_context>

<pallas_src>
import jax
import jax.numpy as jnp
from jax.experimental import pallas as pl
from jax.experimental.pallas import tpu as pltpu


_LANES = 512            # lane width per block (multiple of 128 -> unmasked stores)
_MAX_BLOCK_ROWS = 512   # sublane rows per block (multiple of 8); 1 MiB f32 tile
_MIN_PALLAS_ELEMS = 1024  # below this, a pallas_call is pure launch overhead


def _round_up(x, m):
    return ((x + m - 1) // m) * m


def _austin_add_kernel(a_ref, x_ref, o_ref):
    # a_ref lives in SMEM as a (1, 1) scalar; broadcast on the VPU.
    o_ref[...] = x_ref[...] + a_ref[0, 0]


def _pallas_add_scalar(x_flat, a):
    """x_flat: 1-D f32 array (size >= _MIN_PALLAS_ELEMS). Returns x_flat + a."""
    n = x_flat.shape[0]
    c = _LANES
    r = _round_up(n, c) // c

    if r <= _MAX_BLOCK_ROWS:
        br = _round_up(r, 8)          # single row-block covering everything
    else:
        br = _MAX_BLOCK_ROWS          # multiple of 8 by construction
    r_pad = _round_up(r, br)

    total_pad = r_pad * c
    x2d = jnp.pad(x_flat, (0, total_pad - n)).reshape(r_pad, c)
    a_smem = jnp.reshape(a, (1, 1)).astype(jnp.float32)

    grid = (r_pad // br,)

    out2d = pl.pallas_call(
        _austin_add_kernel,
        out_shape=jax.ShapeDtypeStruct((r_pad, c), jnp.float32),
        grid=grid,
        in_specs=[
            # Single scalar parameter, kept in SMEM (no per-element HBM traffic).
            pl.BlockSpec(memory_space=pltpu.MemorySpace.SMEM),
            # Lane-dense VMEM tiles of the input, pipelined over rows.
            pl.BlockSpec((br, c), lambda i: (i, 0)),
        ],
        out_specs=pl.BlockSpec((br, c), lambda i: (i, 0)),
        compiler_params=pltpu.CompilerParams(
            dimension_semantics=("parallel",),
        ),
    )(a_smem, x2d)

    return out2d.reshape(-1)[:n]


def austin_forward(x, a):
    """Forward pass of Austin: x + a (x may be 0-D or any-shaped f32 array)."""
    x = jnp.asarray(x, jnp.float32)
    a = jnp.asarray(a, jnp.float32)

    # Tiny / scalar fast path: let XLA do the add directly (kernel launch
    # overhead would dominate; semantics are identical).
    if x.ndim == 0 or x.size < _MIN_PALLAS_ELEMS:
        return x + a

    orig_shape = x.shape
    out_flat = _pallas_add_scalar(x.reshape(-1), a)
    return out_flat.reshape(orig_shape)


class Austin:
    """JAX/Pallas port of the PyTorch Austin module."""

    def __init__(self):
        # Matches torch.tensor(2.0) in __init__.
        self.a = jnp.float32(2.0)

    def __call__(self, imput):
        return austin_forward(imput, self.a)


if __name__ == "__main__":
    austin = Austin()

    # 1) The exact usage from the reference script: a 0-D scalar input.
    #    (Handled by the plain-JAX fast path, as Pallas is pure overhead here.)
    x_scalar = jnp.float32(1.0)
    out_scalar = jax.block_until_ready(austin(x_scalar))
    assert out_scalar.shape == ()
    assert jnp.allclose(out_scalar, jnp.float32(3.0)), out_scalar

    # 2) A small array input that exercises the Pallas kernel path.
    key = jax.random.PRNGKey(0)
    x_arr = jax.random.normal(key, (2, 4, 16, 16), dtype=jnp.float32)  # 2048 elems
    out_arr = jax.block_until_ready(austin(x_arr))
    expected = x_arr + jnp.float32(2.0)
    assert out_arr.shape == x_arr.shape
    assert jnp.allclose(out_arr, expected, atol=0.0, rtol=0.0), "mismatch vs reference"

    print("KERNEL_OK")
</pallas_src>

<mosaic_0001>
module attributes {stable_mosaic.version = 11 : i64} {
  func.func @_austin_add_kernel(%arg0: i32, %arg1: memref<1x1xf32, #tpu.memory_space<smem>>, %arg2: memref<8x512xf32, #tpu.memory_space<vmem>>, %arg3: memref<8x512xf32, #tpu.memory_space<vmem>>) attributes {dimension_semantics = [#tpu.dimension_semantics<parallel>], iteration_bounds = array<i64: 1>, scalar_prefetch = 0 : i64, scratch_operands = 0 : i64, tpu.core_type = #tpu.core_type<tc>, window_params = [{transform_indices = @transform_0, window_bounds = array<i64: 1, 1>}, {transform_indices = @transform_1, window_bounds = array<i64: 8, 512>}, {transform_indices = @transform_2, window_bounds = array<i64: 8, 512>}]} {
    %c0 = arith.constant 0 : index
    %c0_0 = arith.constant 0 : index
    %0 = vector.load %arg2[%c0, %c0_0] : memref<8x512xf32, #tpu.memory_space<vmem>>, vector<8x512xf32>
    %c0_1 = arith.constant 0 : index
    %c0_2 = arith.constant 0 : index
    %1 = memref.load %arg1[%c0_1, %c0_2] : memref<1x1xf32, #tpu.memory_space<smem>>
    %2 = vector.broadcast %1 : f32 to vector<8x512xf32>
    %3 = arith.addf %0, %2 : vector<8x512xf32>
    %c0_3 = arith.constant 0 : index
    %c0_4 = arith.constant 0 : index
    %4 = vector.load %arg3[%c0_3, %c0_4] : memref<8x512xf32, #tpu.memory_space<vmem>>, vector<8x512xf32>
    tpu.vector_store %arg3[%c0_3, %c0_4], %3 {strides = array<i32>} : memref<8x512xf32, #tpu.memory_space<vmem>>, vector<8x512xf32>,
    return
  }
  func.func @transform_0(%arg0: i32) -> (i32, i32) {
    %c0_i32 = arith.constant 0 : i32
    %c0_i32_0 = arith.constant 0 : i32
    %c0_i32_1 = arith.constant 0 : i32
    return %c0_i32, %c0_i32_0 : i32, i32
  }
  func.func @transform_1(%arg0: i32) -> (i32, i32) {
    %c0_i32 = arith.constant 0 : i32
    %c0_i32_0 = arith.constant 0 : i32
    return %arg0, %c0_i32 : i32, i32
  }
  func.func @transform_2(%arg0: i32) -> (i32, i32) {
    %c0_i32 = arith.constant 0 : i32
    %c0_i32_0 = arith.constant 0 : i32
    return %arg0, %c0_i32 : i32, i32
  }
}

</mosaic_0001>

<llo_original>
// kernel: tpu_custom_call.1
$region0: #{tpu_custom_call.1}
  #allocation0 [shape = 'u32[]', space=smem, size = 0x4, offset = 0x4, fixed_abs, tag = 'smem constant byte address 0x4 - core index']
  #allocation1 [shape = 'u32[72,128]{1,0:T(1,128)}', space=vmem, size = 0x9000, scoped, tag = 'internal scratch']
  #allocation2 [shape = 'f32[1,1]{1,0:T(1,128)S(6)}', space=smem, size = 0x200, scoped, tag = 'scoped memory for tpu_custom_call.1']
  %s0 = inlined_call_operand.<no memory space> [shape: f32[1,1], index: 0, kind: input, shape index: {}]
  %s1 = inlined_call_operand.hbm [shape: f32[8,512], index: 1, kind: input, shape index: {}]
  %s2 = inlined_call_operand.hbm [shape: f32[8,512], index: 2, kind: output, shape index: {}]
  %s3 = sld [smem:[#allocation0]]
  $region22: #{tpu_custom_call.1} parent=0
    _
  %s5 = ssub.s32 1, %s3
  %s6 = scalar_select 0, %s5, %s3
  %7 = sst [smem:[#allocation2]] %s0
  $region1: #{tpu_custom_call.1} parent=0
    #allocation3 [shape = 'u8[16384]{0}', space=vmem, size = 0x4000, scoped, tag = 'input window, operand 1, single buffered']
    #allocation4 [shape = 's32[1]{0}', space=sflag, size = 0x4, scoped, tag = 'scoped memory for tpu_custom_call.1']
    #allocation5 [shape = 's32[1]{0}', space=sflag, size = 0x4, scoped, tag = 'scoped memory for tpu_custom_call.1']
    #allocation6 [shape = 'u8[16384]{0}', space=vmem, size = 0x4000, scoped, tag = 'output window, operand 0, single buffered']
    %8 = vsyncpa [#allocation4], 0
    %9 = vsyncpa [#allocation5], 0
    // Predicated region
    $region2: #{tpu_custom_call.1} parent=1 // pred_check
      _
    $region3: #{tpu_custom_call.1} parent=1 // pred_check_branch
      %11 = sbr.rel (0) target = $region5
    $region4: #{tpu_custom_call.1} parent=1 // pred_region
      _
    $region5: #{tpu_custom_call.1} parent=1 // pred_fallthru
      _
    // Predicated region
    $region6: #{tpu_custom_call.1} parent=1 // pred_check
      _
    $region7: #{tpu_custom_call.1} parent=1 // pred_check_branch
      %13 = sbr.rel (0) target = $region9
    $region8: #{tpu_custom_call.1} parent=1 // pred_region
      %15 = vsyncadd [#allocation4], 0
      %s17 = sshll.u32 %s1, 4
      %s18 = int_to_ptr.hbm [resolvable:$true] %s17
      %s19 = sshll.u32 [#allocation3], 4
      %s20 = int_to_ptr.vmem [resolvable:$true] %s19
      %22 = dma.hbm_to_vmem [thread:$0]  %s18, 512, %s20, [#allocation4]
    $region9: #{tpu_custom_call.1} parent=1 // pred_fallthru
      _
    // Predicated region
    $region10: #{tpu_custom_call.1} parent=1 // pred_check
      _
    $region11: #{tpu_custom_call.1} parent=1 // pred_check_branch
      %24 = sbr.rel (0) target = $region13
    $region12: #{tpu_custom_call.1} parent=1 // pred_region
      %26 = dma.done [#allocation4], 512
    $region13: #{tpu_custom_call.1} parent=1 // pred_fallthru
      _
    %v27 = vld [vmem:[#allocation3] sm:$0xff]
    %v28 = vld [vmem:[#allocation3 + $0x8] sm:$0xff]
    %v29 = vld [vmem:[#allocation3 + $0x10] sm:$0xff]
    %v30 = vld [vmem:[#allocation3 + $0x18] sm:$0xff]
    %s31 = sld [smem:[#allocation2]]
    %v32 = vstv %s31
    %v33 = vadd.f32 %v27, %v32
    %v34 = vadd.f32 %v28, %v32
    %v35 = vadd.f32 %v29, %v32
    %v36 = vadd.f32 %v30, %v32
    %37 = vst [vmem:[#allocation6] sm:$0xff] %v33
    %38 = vst [vmem:[#allocation6 + $0x8] sm:$0xff] %v34
    %39 = vst [vmem:[#allocation6 + $0x10] sm:$0xff] %v35
    %40 = vst [vmem:[#allocation6 + $0x18] sm:$0xff] %v36
    // Predicated region
    $region14: #{tpu_custom_call.1} parent=1 // pred_check
      _
    $region15: #{tpu_custom_call.1} parent=1 // pred_check_branch
      %42 = sbr.rel (0) target = $region17
    $region16: #{tpu_custom_call.1} parent=1 // pred_region
      %44 = vsyncadd [#allocation5], 0
      %s46 = sshll.u32 [#allocation6], 4
      %s47 = int_to_ptr.vmem [resolvable:$true] %s46
      %s48 = sshll.u32 %s2, 4
      %s49 = int_to_ptr.hbm [resolvable:$true] %s48
      %51 = dma.vmem_to_hbm [thread:$0]  %s47, 512, %s49, [#allocation5]
    $region17: #{tpu_custom_call.1} parent=1 // pred_fallthru
      _
    // Predicated region
    $region18: #{tpu_custom_call.1} parent=1 // pred_check
      _
    $region19: #{tpu_custom_call.1} parent=1 // pred_check_branch
      %53 = sbr.rel (0) target = $region21
    $region20: #{tpu_custom_call.1} parent=1 // pred_region
      %55 = dma.done [#allocation5], 512
    $region21: #{tpu_custom_call.1} parent=1 // pred_fallthru
      _
    %56 = vsyncpa [#allocation4], 1
    %57 = vsyncpa [#allocation5], 1

</llo_original>
